<compile_context>
chip_gen: v6e
topology: v6e:2x2x1
jax: 0.10.0
libtpu: 0.0.40
codegen_flags: <defaults>
</compile_context>

<pallas_src>
import functools

import jax
import jax.numpy as jnp
from jax.experimental import pallas as pl
from jax.experimental.pallas import tpu as pltpu

# Hyperparameters implied by the module (ds_size, n_class are globals in the
# original script); chosen small & consistent.
DS_SIZE = 2
N_CLASS = 10
IN_FEATURES = 128 * DS_SIZE ** 2          # 512
OUT_FEATURES = N_CLASS + 1                # 11
OUT_PAD = 128                             # lane-dense padded head width
SUBLANE = 8
MAX_BATCH_TILE = 4096                     # ~18.5 MiB double-buffered @ f32 stream
VMEM_LIMIT_BYTES = 32 * 1024 * 1024       # explicit: v5e default is only 16 MiB


def _round_up(x, m):
    return (x + m - 1) // m * m


def _disc_kernel(x_ref, w_ref, b_ref, o_ref):
    # x_ref: (TB, F) f32 (streamed; cast to bf16 here so no separate HBM cast
    # pass exists), w_ref: (F, OUT_PAD) bf16 (resident), b_ref: (1, OUT_PAD)
    # f32 (resident), o_ref: (TB, OUT_PAD) bf16.
    x = x_ref[...].astype(jnp.bfloat16)
    y = jnp.dot(x, w_ref[...], preferred_element_type=jnp.float32)
    y = y + b_ref[...]                       # broadcast bias over batch rows
    # sigmoid = 1 / (1 + exp(-y)); exp + approx reciprocal both hit the EUP
    # slot.  Padded lanes evaluate to sigmoid(0)=0.5 and are sliced away in
    # the wrapper; padded edge rows are masked on writeback by Pallas.
    sig = pl.reciprocal(1.0 + jnp.exp(-y), approx=True)
    o_ref[...] = sig.astype(o_ref.dtype)


def prepare_params(weight, bias):
    """One-time parameter prep (hoisted out of the per-call forward path).

    weight: (OUT_FEATURES, IN_FEATURES) f32, PyTorch Linear layout.
    bias:   (OUT_FEATURES,) f32.
    Returns ((IN_FEATURES, OUT_PAD) bf16, (1, OUT_PAD) f32), zero-padded so
    the extra lanes never leak into the real outputs.
    """
    w_t = jnp.zeros((IN_FEATURES, OUT_PAD), jnp.float32)
    w_t = w_t.at[:, :OUT_FEATURES].set(weight.T.astype(jnp.float32))
    b_p = jnp.zeros((1, OUT_PAD), jnp.float32)
    b_p = b_p.at[0, :OUT_FEATURES].set(bias.astype(jnp.float32))
    return w_t.astype(jnp.bfloat16), b_p


@functools.partial(jax.jit, static_argnames=("block_b",))
def discriminator_forward(img, w_t_bf16, b_pad, block_b=MAX_BATCH_TILE):
    """img: (B, C, H, W) f32.  Params pre-prepared by `prepare_params`."""
    B = img.shape[0]
    # Empty nn.Sequential `model` is identity; flatten like torch .view (row-major).
    x = img.reshape(B, -1)
    F = x.shape[1]
    assert F == IN_FEATURES, (F, IN_FEATURES)

    # Batch tile: sublane-aligned, capped for VMEM.  No host-side pad/cast:
    # grid uses cdiv and the (only) partial edge block is masked by Pallas.
    b_rounded = _round_up(B, SUBLANE)
    tb = min(block_b, b_rounded)
    # v7x: give both TensorCores work — force >= 2 grid steps whenever the
    # batch spans at least two sublane tiles (no-op perf-wise on v5e/v6e).
    if b_rounded >= 2 * SUBLANE and tb >= b_rounded:
        tb = _round_up(b_rounded // 2, SUBLANE)
    grid = (pl.cdiv(B, tb),)

    cost = pl.CostEstimate(
        flops=2 * B * F * OUT_PAD,
        transcendentals=B * OUT_PAD,
        bytes_accessed=B * F * 4 + F * OUT_PAD * 2 + OUT_PAD * 4 + B * OUT_PAD * 2,
    )

    out = pl.pallas_call(
        _disc_kernel,
        out_shape=jax.ShapeDtypeStruct((B, OUT_PAD), jnp.bfloat16),
        grid=grid,
        in_specs=[
            pl.BlockSpec((tb, F), lambda i: (i, 0)),        # streamed activations (f32)
            pl.BlockSpec((F, OUT_PAD), lambda i: (0, 0)),   # resident weight (bf16)
            pl.BlockSpec((1, OUT_PAD), lambda i: (0, 0)),   # resident bias (f32)
        ],
        out_specs=pl.BlockSpec((tb, OUT_PAD), lambda i: (i, 0)),
        compiler_params=pltpu.CompilerParams(
            dimension_semantics=("parallel",),              # shard batch over TCs (v7x)
            vmem_limit_bytes=VMEM_LIMIT_BYTES,
        ),
        cost_estimate=cost,
    )(x, w_t_bf16, b_pad)

    # Drop lane padding (no batch padding was added).
    return out[:, :OUT_FEATURES]


if __name__ == "__main__":
    key = jax.random.PRNGKey(0)
    k_img, k_w, k_b = jax.random.split(key, 3)

    # Input consistent with identity `model` + Linear(128*ds_size**2, ...):
    # (B=2, C=128, H=ds_size, W=ds_size) flattens to 128*ds_size**2 features.
    B = 2
    img = jax.random.normal(k_img, (B, 128, DS_SIZE, DS_SIZE), dtype=jnp.float32)

    # Deterministic parameter init (PyTorch Linear uses U(-k, k), k=1/sqrt(in)).
    bound = 1.0 / (IN_FEATURES ** 0.5)
    weight = jax.random.uniform(k_w, (OUT_FEATURES, IN_FEATURES),
                                minval=-bound, maxval=bound, dtype=jnp.float32)
    bias = jax.random.uniform(k_b, (OUT_FEATURES,),
                              minval=-bound, maxval=bound, dtype=jnp.float32)

    # One-time param prep (transpose/pad/cast hoisted off the forward path).
    w_t_bf16, b_pad = prepare_params(weight, bias)

    validaty = discriminator_forward(img, w_t_bf16, b_pad)
    jax.block_until_ready(validaty)
    assert validaty.shape == (B, OUT_FEATURES)
    val_f32 = validaty.astype(jnp.float32)

    # Reference 1: same bf16 rounding of inputs/weights, f32 accumulation
    # (tolerance loosened for bf16 output storage + approx reciprocal).
    x_f32 = img.reshape(B, -1)
    x_bf = x_f32.astype(jnp.bfloat16).astype(jnp.float32)
    w_bf = weight.T.astype(jnp.bfloat16).astype(jnp.float32)
    ref_bf16 = jax.nn.sigmoid(x_bf @ w_bf + bias)
    assert jnp.allclose(val_f32, ref_bf16, atol=5e-3), "mismatch vs bf16 reference"

    # Reference 2: pure f32 reference (looser tolerance for bf16 streams/output).
    ref_f32 = jax.nn.sigmoid(x_f32 @ weight.T + bias)
    assert jnp.allclose(val_f32, ref_f32, atol=1.2e-2), "mismatch vs f32 reference"

    print("KERNEL_OK")
</pallas_src>

<mosaic_0001>
module attributes {stable_mosaic.version = 11 : i64} {
  func.func @_disc_kernel(%arg0: i32, %arg1: memref<8x512xf32, #tpu.memory_space<vmem>>, %arg2: memref<512x128xbf16, #tpu.memory_space<vmem>>, %arg3: memref<1x128xf32, #tpu.memory_space<vmem>>, %arg4: memref<8x128xbf16, #tpu.memory_space<vmem>>) attributes {dimension_semantics = [#tpu.dimension_semantics<parallel>], iteration_bounds = array<i64: 1>, scalar_prefetch = 0 : i64, scratch_operands = 0 : i64, tpu.core_type = #tpu.core_type<tc>, window_params = [{transform_indices = @transform_0, window_bounds = array<i64: 8, 512>}, {pipeline_mode = #tpu.pipeline_mode<synchronous>, transform_indices = @transform_1, window_bounds = array<i64: 512, 128>}, {pipeline_mode = #tpu.pipeline_mode<synchronous>, transform_indices = @transform_2, window_bounds = array<i64: 1, 128>}, {transform_indices = @transform_3, window_bounds = array<i64: 8, 128>}]} {
    %c0 = arith.constant 0 : index
    %c0_0 = arith.constant 0 : index
    %0 = vector.load %arg1[%c0, %c0_0] : memref<8x512xf32, #tpu.memory_space<vmem>>, vector<8x512xf32>
    %1 = arith.truncf %0 : vector<8x512xf32> to vector<8x512xbf16>
    %c0_1 = arith.constant 0 : index
    %c0_2 = arith.constant 0 : index
    %2 = vector.load %arg2[%c0_1, %c0_2] : memref<512x128xbf16, #tpu.memory_space<vmem>>, vector<512x128xbf16>
    %cst = arith.constant dense<0.000000e+00> : vector<8x128xf32>
    %3 = tpu.matmul %1, %2, %cst {dimension_numbers = #tpu.dot_dimension_numbers<[1], [0], [0], [1], [0, 0, 1, 1], [], []>} : vector<8x512xbf16>, vector<512x128xbf16>, vector<8x128xf32> -> vector<8x128xf32>
    %c0_3 = arith.constant 0 : index
    %c0_4 = arith.constant 0 : index
    %4 = vector.load %arg3[%c0_3, %c0_4] : memref<1x128xf32, #tpu.memory_space<vmem>>, vector<1x128xf32>
    %5 = vector.broadcast %4 : vector<1x128xf32> to vector<8x128xf32>
    %6 = arith.addf %3, %5 : vector<8x128xf32>
    %cst_5 = arith.constant 0.000000e+00 : f32
    %7 = vector.broadcast %cst_5 : f32 to vector<8x128xf32>
    %8 = arith.subf %7, %6 : vector<8x128xf32>
    %9 = math.exp %8 : vector<8x128xf32>
    %cst_6 = arith.constant 1.000000e+00 : f32
    %10 = vector.broadcast %cst_6 : f32 to vector<8x128xf32>
    %11 = arith.addf %10, %9 : vector<8x128xf32>
    %12 = tpu.reciprocal %11 {approx = true} : vector<8x128xf32> -> vector<8x128xf32>
    %13 = arith.truncf %12 : vector<8x128xf32> to vector<8x128xbf16>
    %c0_7 = arith.constant 0 : index
    %c0_8 = arith.constant 0 : index
    %14 = vector.load %arg4[%c0_7, %c0_8] : memref<8x128xbf16, #tpu.memory_space<vmem>>, vector<8x128xbf16>
    tpu.vector_store %arg4[%c0_7, %c0_8], %13 {strides = array<i32>} : memref<8x128xbf16, #tpu.memory_space<vmem>>, vector<8x128xbf16>,
    return
  }
  func.func @transform_0(%arg0: i32) -> (i32, i32) {
    %c0_i32 = arith.constant 0 : i32
    %c0_i32_0 = arith.constant 0 : i32
    return %arg0, %c0_i32 : i32, i32
  }
  func.func @transform_1(%arg0: i32) -> (i32, i32) {
    %c0_i32 = arith.constant 0 : i32
    %c0_i32_0 = arith.constant 0 : i32
    %c0_i32_1 = arith.constant 0 : i32
    return %c0_i32, %c0_i32_0 : i32, i32
  }
  func.func @transform_2(%arg0: i32) -> (i32, i32) {
    %c0_i32 = arith.constant 0 : i32
    %c0_i32_0 = arith.constant 0 : i32
    %c0_i32_1 = arith.constant 0 : i32
    return %c0_i32, %c0_i32_0 : i32, i32
  }
  func.func @transform_3(%arg0: i32) -> (i32, i32) {
    %c0_i32 = arith.constant 0 : i32
    %c0_i32_0 = arith.constant 0 : i32
    return %arg0, %c0_i32 : i32, i32
  }
}

</mosaic_0001>

<llo_original>
// kernel: discriminator_forward.1
$region0: #{discriminator_forward.1}
  #allocation0 [shape = 'u32[]', space=smem, size = 0x4, offset = 0x4, fixed_abs, tag = 'smem constant byte address 0x4 - core index']
  #allocation1 [shape = 'u32[144,128]{1,0:T(1,128)}', space=vmem, size = 0x12000, scoped, tag = 'internal scratch']
  %s0 = inlined_call_operand.vmem [shape: f32[2,512], index: 0, kind: input, shape index: {}]
  %s1 = inlined_call_operand.vmem [shape: bf16[512,128], index: 1, kind: input, shape index: {}]
  %s2 = inlined_call_operand.vmem [shape: f32[1,128], index: 2, kind: input, shape index: {}]
  %s3 = inlined_call_operand.hbm [shape: bf16[2,128], index: 3, kind: output, shape index: {}]
  %s4 = sld [smem:[#allocation0]]
  $region22: #{discriminator_forward.1} parent=0
    _
  %s6 = ssub.s32 1, %s4
  %s7 = scalar_select 0, %s6, %s4
  $region1: #{discriminator_forward.1} parent=0
    #allocation2 [shape = 'u8[2048]{0}', space=vmem, size = 0x800, scoped, tag = 'output window, operand 0, single buffered']
    #allocation3 [shape = 's32[1]{0}', space=sflag, size = 0x4, scoped, tag = 'scoped memory for discriminator_forward.1']
    %8 = vsyncpa [#allocation3], 0
    // Predicated region
    $region2: #{discriminator_forward.1} parent=1 // pred_check
      _
    $region3: #{discriminator_forward.1} parent=1 // pred_check_branch
      %10 = sbr.rel (0) target = $region5
    $region4: #{discriminator_forward.1} parent=1 // pred_region
      _
    $region5: #{discriminator_forward.1} parent=1 // pred_fallthru
      _
    // Predicated region
    $region6: #{discriminator_forward.1} parent=1 // pred_check
      _
    $region7: #{discriminator_forward.1} parent=1 // pred_check_branch
      %12 = sbr.rel (0) target = $region9
    $region8: #{discriminator_forward.1} parent=1 // pred_region
      _
    $region9: #{discriminator_forward.1} parent=1 // pred_fallthru
      _
    // Predicated region
    $region10: #{discriminator_forward.1} parent=1 // pred_check
      _
    $region11: #{discriminator_forward.1} parent=1 // pred_check_branch
      %14 = sbr.rel (0) target = $region13
    $region12: #{discriminator_forward.1} parent=1 // pred_region
      _
    $region13: #{discriminator_forward.1} parent=1 // pred_fallthru
      _
    %v16 = vld [vmem:[%s0] sm:$0xff]
    %v17 = vld [vmem:[%s0 + $0x8] sm:$0xff]
    %v18 = vld [vmem:[%s0 + $0x10] sm:$0xff]
    %v19 = vld [vmem:[%s0 + $0x18] sm:$0xff]
    %v24 = vcombine.low %v16, %v17
    %v25 = vcombine.high %v16, %v17
    %v26 = vcombine.low %v18, %v19
    %v27 = vcombine.high %v18, %v19
    %v29 = vunpack.c.l.s4 1983009808
    %v30 = vunpack.c.0.s8 %v29
    %v31 = vlaneseq
    %v32 = vshrl.u32 %v31, 7
    %v33 = vsub.s32 %v30, %v32
    %v34 = vrot.slane %v24, %v33
    %v36 = vunpack.c.l.s4 1983009808
    %v37 = vunpack.c.0.s8 %v36
    %v38 = vlaneseq
    %v39 = vshrl.u32 %v38, 7
    %v40 = vsub.s32 %v37, %v39
    %v41 = vrot.slane %v25, %v40
    %v43 = vunpack.c.l.s4 1983009808
    %v44 = vunpack.c.0.s8 %v43
    %v45 = vlaneseq
    %v46 = vshrl.u32 %v45, 7
    %v47 = vsub.s32 %v44, %v46
    %v48 = vrot.slane %v26, %v47
    %v50 = vunpack.c.l.s4 1983009808
    %v51 = vunpack.c.0.s8 %v50
    %v52 = vlaneseq
    %v53 = vshrl.u32 %v52, 7
    %v54 = vsub.s32 %v51, %v53
    %v55 = vrot.slane %v27, %v54
    %v56 = vcombine.low %v34, %v48
    %v57 = vcombine.high %v34, %v48
    %v58 = vcombine.low %v41, %v55
    %v59 = vcombine.high %v41, %v55
    %v64 = vpack.c.bf16 %v56, %v56
    %v65 = vpack.c.bf16 %v57, %v57
    %v66 = vpack.c.bf16 %v58, %v58
    %v67 = vpack.c.bf16 %v59, %v59
    %v68 = vld [vmem:[%s1] sm:$0xf]
    %v69 = vld [vmem:[%s1 + $0x4] sm:$0xf]
    %v70 = vld [vmem:[%s1 + $0x8] sm:$0xf]
    %v71 = vld [vmem:[%s1 + $0xc] sm:$0xf]
    %v72 = vld [vmem:[%s1 + $0x10] sm:$0xf]
    %v73 = vld [vmem:[%s1 + $0x14] sm:$0xf]
    %v74 = vld [vmem:[%s1 + $0x18] sm:$0xf]
    %v75 = vld [vmem:[%s1 + $0x1c] sm:$0xf]
    %v76 = vld [vmem:[%s1 + $0x20] sm:$0xf]
    %v77 = vld [vmem:[%s1 + $0x24] sm:$0xf]
    %v78 = vld [vmem:[%s1 + $0x28] sm:$0xf]
    %v79 = vld [vmem:[%s1 + $0x2c] sm:$0xf]
    %v80 = vld [vmem:[%s1 + $0x30] sm:$0xf]
    %v81 = vld [vmem:[%s1 + $0x34] sm:$0xf]
    %v82 = vld [vmem:[%s1 + $0x38] sm:$0xf]
    %v83 = vld [vmem:[%s1 + $0x3c] sm:$0xf]
    %v84 = vld [vmem:[%s1 + $0x40] sm:$0xf]
    %v85 = vld [vmem:[%s1 + $0x44] sm:$0xf]
    %v86 = vld [vmem:[%s1 + $0x48] sm:$0xf]
    %v87 = vld [vmem:[%s1 + $0x4c] sm:$0xf]
    %v88 = vld [vmem:[%s1 + $0x50] sm:$0xf]
    %v89 = vld [vmem:[%s1 + $0x54] sm:$0xf]
    %v90 = vld [vmem:[%s1 + $0x58] sm:$0xf]
    %v91 = vld [vmem:[%s1 + $0x5c] sm:$0xf]
    %v92 = vld [vmem:[%s1 + $0x60] sm:$0xf]
    %v93 = vld [vmem:[%s1 + $0x64] sm:$0xf]
    %v94 = vld [vmem:[%s1 + $0x68] sm:$0xf]
    %v95 = vld [vmem:[%s1 + $0x6c] sm:$0xf]
    %v96 = vld [vmem:[%s1 + $0x70] sm:$0xf]
    %v97 = vld [vmem:[%s1 + $0x74] sm:$0xf]
    %v98 = vld [vmem:[%s1 + $0x78] sm:$0xf]
    %v99 = vld [vmem:[%s1 + $0x7c] sm:$0xf]
    %v100 = vld [vmem:[%s1 + $0x80] sm:$0xf]
    %v101 = vld [vmem:[%s1 + $0x84] sm:$0xf]
    %v102 = vld [vmem:[%s1 + $0x88] sm:$0xf]
    %v103 = vld [vmem:[%s1 + $0x8c] sm:$0xf]
    %v104 = vld [vmem:[%s1 + $0x90] sm:$0xf]
    %v105 = vld [vmem:[%s1 + $0x94] sm:$0xf]
    %v106 = vld [vmem:[%s1 + $0x98] sm:$0xf]
    %v107 = vld [vmem:[%s1 + $0x9c] sm:$0xf]
    %v108 = vld [vmem:[%s1 + $0xa0] sm:$0xf]
    %v109 = vld [vmem:[%s1 + $0xa4] sm:$0xf]
    %v110 = vld [vmem:[%s1 + $0xa8] sm:$0xf]
    %v111 = vld [vmem:[%s1 + $0xac] sm:$0xf]
    %v112 = vld [vmem:[%s1 + $0xb0] sm:$0xf]
    %v113 = vld [vmem:[%s1 + $0xb4] sm:$0xf]
    %v114 = vld [vmem:[%s1 + $0xb8] sm:$0xf]
    %v115 = vld [vmem:[%s1 + $0xbc] sm:$0xf]
    %v116 = vld [vmem:[%s1 + $0xc0] sm:$0xf]
    %v117 = vld [vmem:[%s1 + $0xc4] sm:$0xf]
    %v118 = vld [vmem:[%s1 + $0xc8] sm:$0xf]
    %v119 = vld [vmem:[%s1 + $0xcc] sm:$0xf]
    %v120 = vld [vmem:[%s1 + $0xd0] sm:$0xf]
    %v121 = vld [vmem:[%s1 + $0xd4] sm:$0xf]
    %v122 = vld [vmem:[%s1 + $0xd8] sm:$0xf]
    %v123 = vld [vmem:[%s1 + $0xdc] sm:$0xf]
    %v124 = vld [vmem:[%s1 + $0xe0] sm:$0xf]
    %v125 = vld [vmem:[%s1 + $0xe4] sm:$0xf]
    %v126 = vld [vmem:[%s1 + $0xe8] sm:$0xf]
    %v127 = vld [vmem:[%s1 + $0xec] sm:$0xf]
    %v128 = vld [vmem:[%s1 + $0xf0] sm:$0xf]
    %v129 = vld [vmem:[%s1 + $0xf4] sm:$0xf]
    %v130 = vld [vmem:[%s1 + $0xf8] sm:$0xf]
    %v131 = vld [vmem:[%s1 + $0xfc] sm:$0xf]
    %v132 = vld [vmem:[%s2] sm:$0x1]
    %v134 = vlaneseq
    %v135 = vshrl.u32 %v134, 7
    %v136 = vsub.s32 0, %v135
    %v137 = vrot.slane %v132, %v136
    %v203 = vunpack.c.l.b16 %v68
    %v204 = vunpack.c.l.b16 %v69
    %v205 = vunpack.c.l.b16 %v70
    %v206 = vunpack.c.l.b16 %v71
    %v207 = vunpack.c.l.b16 %v72
    %v208 = vunpack.c.l.b16 %v73
    %v209 = vunpack.c.l.b16 %v74
    %v210 = vunpack.c.l.b16 %v75
    %v211 = vunpack.c.l.b16 %v76
    %v212 = vunpack.c.l.b16 %v77
    %v213 = vunpack.c.l.b16 %v78
    %v214 = vunpack.c.l.b16 %v79
    %v215 = vunpack.c.l.b16 %v80
    %v216 = vunpack.c.l.b16 %v81
    %v217 = vunpack.c.l.b16 %v82
    %v218 = vunpack.c.l.b16 %v83
    %v219 = vunpack.c.l.b16 %v84
    %v220 = vunpack.c.l.b16 %v85
    %v221 = vunpack.c.l.b16 %v86
    %v222 = vunpack.c.l.b16 %v87
    %v223 = vunpack.c.l.b16 %v88
    %v224 = vunpack.c.l.b16 %v89
    %v225 = vunpack.c.l.b16 %v90
    %v226 = vunpack.c.l.b16 %v91
    %v227 = vunpack.c.l.b16 %v92
    %v228 = vunpack.c.l.b16 %v93
    %v229 = vunpack.c.l.b16 %v94
    %v230 = vunpack.c.l.b16 %v95
    %v231 = vunpack.c.l.b16 %v96
    %v232 = vunpack.c.l.b16 %v97
    %v233 = vunpack.c.l.b16 %v98
    %v234 = vunpack.c.l.b16 %v99
    %v235 = vunpack.c.l.b16 %v100
    %v236 = vunpack.c.l.b16 %v101
    %v237 = vunpack.c.l.b16 %v102
    %v238 = vunpack.c.l.b16 %v103
    %v239 = vunpack.c.l.b16 %v104
    %v240 = vunpack.c.l.b16 %v105
    %v241 = vunpack.c.l.b16 %v106
    %v242 = vunpack.c.l.b16 %v107
    %v243 = vunpack.c.l.b16 %v108
    %v244 = vunpack.c.l.b16 %v109
    %v245 = vunpack.c.l.b16 %v110
    %v246 = vunpack.c.l.b16 %v111
    %v247 = vunpack.c.l.b16 %v112
    %v248 = vunpack.c.l.b16 %v113
    %v249 = vunpack.c.l.b16 %v114
    %v250 = vunpack.c.l.b16 %v115
    %v251 = vunpack.c.l.b16 %v116
    %v252 = vunpack.c.l.b16 %v117
    %v253 = vunpack.c.l.b16 %v118
    %v254 = vunpack.c.l.b16 %v119
    %v255 = vunpack.c.l.b16 %v120
    %v256 = vunpack.c.l.b16 %v121
    %v257 = vunpack.c.l.b16 %v122
    %v258 = vunpack.c.l.b16 %v123
    %v259 = vunpack.c.l.b16 %v124
    %v260 = vunpack.c.l.b16 %v125
    %v261 = vunpack.c.l.b16 %v126
    %v262 = vunpack.c.l.b16 %v127
    %v263 = vunpack.c.l.b16 %v128
    %v264 = vunpack.c.l.b16 %v129
    %v265 = vunpack.c.l.b16 %v130
    %v266 = vunpack.c.l.b16 %v131
    %v267 = vpack.c.b16 %v204, %v203
    %v268 = vpack.c.b16 %v206, %v205
    %v269 = vpack.c.b16 %v208, %v207
    %v270 = vpack.c.b16 %v210, %v209
    %v271 = vpack.c.b16 %v212, %v211
    %v272 = vpack.c.b16 %v214, %v213
    %v273 = vpack.c.b16 %v216, %v215
    %v274 = vpack.c.b16 %v218, %v217
    %v275 = vpack.c.b16 %v220, %v219
    %v276 = vpack.c.b16 %v222, %v221
    %v277 = vpack.c.b16 %v224, %v223
    %v278 = vpack.c.b16 %v226, %v225
    %v279 = vpack.c.b16 %v228, %v227
    %v280 = vpack.c.b16 %v230, %v229
    %v281 = vpack.c.b16 %v232, %v231
    %v282 = vpack.c.b16 %v234, %v233
    %v283 = vpack.c.b16 %v236, %v235
    %v284 = vpack.c.b16 %v238, %v237
    %v285 = vpack.c.b16 %v240, %v239
    %v286 = vpack.c.b16 %v242, %v241
    %v287 = vpack.c.b16 %v244, %v243
    %v288 = vpack.c.b16 %v246, %v245
    %v289 = vpack.c.b16 %v248, %v247
    %v290 = vpack.c.b16 %v250, %v249
    %v291 = vpack.c.b16 %v252, %v251
    %v292 = vpack.c.b16 %v254, %v253
    %v293 = vpack.c.b16 %v256, %v255
    %v294 = vpack.c.b16 %v258, %v257
    %v295 = vpack.c.b16 %v260, %v259
    %v296 = vpack.c.b16 %v262, %v261
    %v297 = vpack.c.b16 %v264, %v263
    %v298 = vpack.c.b16 %v266, %v265
    %331 = vmatprep.subr.bf16.mxu0 0
    %332 = vmatpush1.bf16.msra.mxu0 %v274
    %333 = vmatprep.subr.bf16.mxu0 0
    %334 = vmatpush1.bf16.msra.mxu0 %v273
    %335 = vmatprep.subr.bf16.mxu0 0
    %336 = vmatpush1.bf16.msra.mxu0 %v272
    %337 = vmatprep.subr.bf16.mxu0 0
    %338 = vmatpush1.bf16.msra.mxu0 %v271
    %339 = vmatprep.subr.bf16.mxu0 0
    %340 = vmatpush1.bf16.msra.mxu0 %v270
    %341 = vmatprep.subr.bf16.mxu0 0
    %342 = vmatpush1.bf16.msra.mxu0 %v269
    %343 = vmatprep.subr.bf16.mxu0 0
    %344 = vmatpush1.bf16.msra.mxu0 %v268
    %345 = vmatprep.subr.bf16.mxu0 0
    %346 = vmatpush1.bf16.msra.mxu0 %v267
    %347 = vmatprep.subr.bf16.mxu0 0
    %348 = vmatpush2.bf16.msra.mxu0 %v282
    %349 = vmatprep.subr.bf16.mxu0 0
    %350 = vmatpush2.bf16.msra.mxu0 %v281
    %351 = vmatprep.subr.bf16.mxu0 0
    %352 = vmatpush2.bf16.msra.mxu0 %v280
    %353 = vmatprep.subr.bf16.mxu0 0
    %354 = vmatpush2.bf16.msra.mxu0 %v279
    %355 = vmatprep.subr.bf16.mxu0 0
    %356 = vmatpush2.bf16.msra.mxu0 %v278
    %357 = vmatprep.subr.bf16.mxu0 0
    %358 = vmatpush2.bf16.msra.mxu0 %v277
    %359 = vmatprep.subr.bf16.mxu0 0
    %360 = vmatpush2.bf16.msra.mxu0 %v276
    %361 = vmatprep.subr.bf16.mxu0 0
    %362 = vmatpush2.bf16.msra.mxu0 %v275
    %363 = vmatprep.mubr.bf16.mxu0 %v65
    %364 = vmatmul.mubr.bf16.gmra.mxu0 %v64
    %v365 = vpop.f32.mrf.mxu0
    %v366 = vadd.f32 %v137, %v365
    %v367 = vpop.f32.mrf.mxu0
    %v368 = vpop.f32.mrf.mxu0
    %v369 = vpop.f32.mrf.mxu0
    %370 = vdwg.mxu0
    %371 = vmatprep.subr.bf16.mxu0 0
    %372 = vmatpush1.bf16.msra.mxu0 %v290
    %373 = vmatprep.subr.bf16.mxu0 0
    %374 = vmatpush1.bf16.msra.mxu0 %v289
    %375 = vmatprep.subr.bf16.mxu0 0
    %376 = vmatpush1.bf16.msra.mxu0 %v288
    %377 = vmatprep.subr.bf16.mxu0 0
    %378 = vmatpush1.bf16.msra.mxu0 %v287
    %379 = vmatprep.subr.bf16.mxu0 0
    %380 = vmatpush1.bf16.msra.mxu0 %v286
    %381 = vmatprep.subr.bf16.mxu0 0
    %382 = vmatpush1.bf16.msra.mxu0 %v285
    %383 = vmatprep.subr.bf16.mxu0 0
    %384 = vmatpush1.bf16.msra.mxu0 %v284
    %385 = vmatprep.subr.bf16.mxu0 0
    %386 = vmatpush1.bf16.msra.mxu0 %v283
    %387 = vmatprep.subr.bf16.mxu0 0
    %388 = vmatpush2.bf16.msra.mxu0 %v298
    %389 = vmatprep.subr.bf16.mxu0 0
    %390 = vmatpush2.bf16.msra.mxu0 %v297
    %391 = vmatprep.subr.bf16.mxu0 0
    %392 = vmatpush2.bf16.msra.mxu0 %v296
    %393 = vmatprep.subr.bf16.mxu0 0
    %394 = vmatpush2.bf16.msra.mxu0 %v295
    %395 = vmatprep.subr.bf16.mxu0 0
    %396 = vmatpush2.bf16.msra.mxu0 %v294
    %397 = vmatprep.subr.bf16.mxu0 0
    %398 = vmatpush2.bf16.msra.mxu0 %v293
    %399 = vmatprep.subr.bf16.mxu0 0
    %400 = vmatpush2.bf16.msra.mxu0 %v292
    %401 = vmatprep.subr.bf16.mxu0 0
    %402 = vmatpush2.bf16.msra.mxu0 %v291
    %403 = vmatprep.mubr.bf16.mxu0 %v67
    %404 = vmatmul.mubr.bf16.gmra.mxu0 %v66
    %v405 = vpop.f32.mrf.mxu0
    %v406 = vadd.f32 %v366, %v405
    %v407 = vpop.f32.mrf.mxu0
    %v408 = vpop.f32.mrf.mxu0
    %v409 = vpop.f32.mrf.mxu0
    %410 = vdwg.mxu0
    %v411 = vsub.f32 0.0, %v406
    %v412 = vmul.f32 %v411, 1.442695
    %v413 = vpow.pop %v412
    %v414 = vadd.f32 %v413, 1.0
    %v415 = vrcp.pop %v414
    %v416 = vpack.c.bf16 %v415, %v415
    %v419 = vunpack.c.l.s4 1966171168
    %v420 = vunpack.c.0.s8 %v419
    %v421 = vlaneseq
    %v422 = vshrl.u32 %v421, 7
    %v423 = vsub.s32 %v420, %v422
    %v424 = vrot.slane %v416, %v423
    %v425 = vcombine.high %v424, %v424
    %v427 = vunpack.c.l.s4 1966171168
    %v428 = vunpack.c.0.s8 %v427
    %v429 = vlaneseq
    %v430 = vshrl.u32 %v429, 7
    %v431 = vsub.s32 %v428, %v430
    %v432 = vrot.slane %v424, %v431
    %v434 = vunpack.c.l.s4 1966171168
    %v435 = vunpack.c.0.s8 %v434
    %v436 = vlaneseq
    %v437 = vshrl.u32 %v436, 7
    %v438 = vsub.s32 %v435, %v437
    %v439 = vrot.slane %v425, %v438
    %v440 = vcombine.high %v432, %v432
    %v441 = vcombine.high %v439, %v439
    %446 = vst [vmem:[#allocation2] sm:$0x1] %v432
    %447 = vst [vmem:[#allocation2 + $0x1] sm:$0x1] %v439
    %448 = vst [vmem:[#allocation2 + $0x2] sm:$0x1] %v440
    %449 = vst [vmem:[#allocation2 + $0x3] sm:$0x1] %v441
    // Predicated region
    $region14: #{discriminator_forward.1} parent=1 // pred_check
      _
    $region15: #{discriminator_forward.1} parent=1 // pred_check_branch
      %451 = sbr.rel (0) target = $region17
    $region16: #{discriminator_forward.1} parent=1 // pred_region
      %s453 = ssub.s32 64, 16
      %454 = vsyncadd [#allocation3], %s453
      %s455 = sshll.u32 [#allocation2], 4
      %s456 = int_to_ptr.vmem [resolvable:$true] %s455
      %461 = dma.vmem_to_hbm [thread:$0]  %s456, 16, %s3, [#allocation3], 16, 16, 1
    $region17: #{discriminator_forward.1} parent=1 // pred_fallthru
      _
    // Predicated region
    $region18: #{discriminator_forward.1} parent=1 // pred_check
      _
    $region19: #{discriminator_forward.1} parent=1 // pred_check_branch
      %463 = sbr.rel (0) target = $region21
    $region20: #{discriminator_forward.1} parent=1 // pred_region
      %464 = dma.done [#allocation3], 64
    $region21: #{discriminator_forward.1} parent=1 // pred_fallthru
      _
    %465 = vsyncpa [#allocation3], 1

</llo_original>
